<compile_context>
chip_gen: v7x
topology: tpu7x:2x2x1
jax: 0.10.0
libtpu: 0.0.40
codegen_flags: <defaults>
</compile_context>

<pallas_src>
import functools
import math

import jax
import jax.numpy as jnp
from jax import lax
from jax.experimental import pallas as pl
from jax.experimental.pallas import tpu as pltpu

_EPS = 1e-10

# ----------------------------- Lanczos (g=7, n=9) ----------------------------
_LANCZOS_G = 7.0
_LANCZOS_COEF = (
    0.99999999999980993,
    676.5203681218851,
    -1259.1392167224028,
    771.32342877765313,
    -176.61502916214059,
    12.507343278686905,
    -0.13857109526572012,
    9.9843695780195716e-6,
    1.5056327351493116e-7,
)
_HALF_LOG_2PI = 0.5 * math.log(2.0 * math.pi)


def _poly_mul(a, b):
    out = [0.0] * (len(a) + len(b) - 1)
    for i, ai in enumerate(a):
        for j, bj in enumerate(b):
            out[i + j] += ai * bj
    return out


def _poly_add(a, b):
    n = max(len(a), len(b))
    return [(a[i] if i < len(a) else 0.0) + (b[i] if i < len(b) else 0.0)
            for i in range(n)]


def _lanczos_numerator_coefs():
    """series(z) = c0 + sum_i c_i/(u+i) == P(u)/Q(u), u = z - 1.

    Returns P's coefficients (highest degree first) for Horner evaluation.
    Q is evaluated in factored form inside the kernel (numerically robust).
    Coefficients are built exactly in Python doubles at trace time.
    """
    q = [1.0]
    for i in range(1, 9):
        q = _poly_mul(q, [float(i), 1.0])          # (u + i), lowest degree first
    p = [c * _LANCZOS_COEF[0] for c in q]
    for i in range(1, 9):
        term = [_LANCZOS_COEF[i]]
        for j in range(1, 9):
            if j != i:
                term = _poly_mul(term, [float(j), 1.0])
        p = _poly_add(p, term)
    return tuple(reversed(p))                      # highest degree first


_P_COEF = _lanczos_numerator_coefs()


def _horner(coefs, u):
    acc = coefs[0] * u + coefs[1]
    for c in coefs[2:]:
        acc = acc * u + c
    return acc


def _lanczos_series(z):
    """Rational Lanczos series: P(z-1) * (1 / prod_{k=0..7}(z+k)).

    One approx reciprocal (EUP) instead of 8 divisions.  The series argument
    is clamped at 4e4 to keep the degree-8 polynomial inside f32 range; for
    such large z the series is 1 + O(1/z), so the perturbation to lgamma is
    < 1e-3 absolute (negligible against lgamma itself).
    """
    z = jnp.minimum(z, 4.0e4)
    u = z - 1.0
    q = z
    for k in range(1, 8):                          # factored product: no cancellation
        q = q * (z + float(k))
    p = _horner(_P_COEF, u)
    return p * pl.reciprocal(q, approx=True)


# --------------------------------- kernels -----------------------------------
def _maybe_mask(vals, *, blocks_per_chunk, tile_rows, n_valid, g_valid, g_pad):
    """Zero out contributions from padded rows / genes (static no-op if none)."""
    if (n_valid % tile_rows == 0) and (g_valid == g_pad):
        return vals
    blk = pl.program_id(0) * blocks_per_chunk + pl.program_id(1)
    rows = blk * tile_rows + lax.broadcasted_iota(jnp.int32, vals.shape, 0)
    cols = lax.broadcasted_iota(jnp.int32, vals.shape, 1)
    return jnp.where((rows < n_valid) & (cols < g_valid), vals, 0.0)


def _store_partial(out_ref, acc_ref, inv_count):
    """Final cross-lane reduce + scale; one-hot write into the (1,8,128) block."""
    total = jnp.sum(acc_ref[...]) * inv_count
    r = lax.broadcasted_iota(jnp.int32, out_ref.shape, 1)
    c = lax.broadcasted_iota(jnp.int32, out_ref.shape, 2)
    out_ref[...] = jnp.where((r == 0) & (c == 0), total, 0.0)


def _nb_case_kernel(mean_ref, disp_ref, pi_ref, x_ref, out_ref, acc_ref, *,
                    blocks_per_chunk, tile_rows, n_valid, g_valid, g_pad,
                    inv_count):
    j = pl.program_id(1)

    @pl.when(j == 0)
    def _():
        acc_ref[...] = jnp.zeros_like(acc_ref)

    mean = mean_ref[...]
    disp = disp_ref[...]
    pi = pi_ref[...]
    x = x_ref[...]

    # t2 with log(1 + mean/(disp+eps)) = log(disp+mean+eps) - log(disp+eps),
    # reusing log(disp+eps); no division.
    log_de = jnp.log(disp + _EPS)
    log_me = jnp.log(mean + _EPS)
    log_dme = jnp.log(disp + mean + _EPS)
    t2 = (disp + x) * (log_dme - log_de) + x * (log_de - log_me)

    # t1 = lgamma(disp+eps) + lgamma(x+1) - lgamma(x+disp+eps), with the three
    # 0.5*log(2*pi) constants folded to one, the three "-t" terms folded to the
    # constant -(g+0.5) (since (disp+eps) + (x+1) - (x+disp+eps) == 1), and the
    # three series logs merged into a single log.
    za = disp + _EPS
    zb = x + 1.0
    zc = x + disp + _EPS
    shift = _LANCZOS_G - 0.5
    sa = _lanczos_series(za)
    sb = _lanczos_series(zb)
    sc = _lanczos_series(zc)
    t1 = (_HALF_LOG_2PI - (_LANCZOS_G + 0.5)
          + (za - 0.5) * jnp.log(za + shift)
          + (zb - 0.5) * jnp.log(zb + shift)
          - (zc - 0.5) * jnp.log(zc + shift)
          + jnp.log(sa * sb * pl.reciprocal(sc, approx=True)))

    nb_case = t1 + t2 - jnp.log(1.0 - pi + _EPS)
    nb_case = _maybe_mask(nb_case, blocks_per_chunk=blocks_per_chunk,
                          tile_rows=tile_rows, n_valid=n_valid,
                          g_valid=g_valid, g_pad=g_pad)

    acc_ref[...] += nb_case

    @pl.when(j == blocks_per_chunk - 1)
    def _():
        _store_partial(out_ref, acc_ref, inv_count)


def _zero_case_kernel(mean_ref, disp_ref, pi_ref, out_ref, acc_ref, *,
                      blocks_per_chunk, tile_rows, n_valid, g_valid, g_pad,
                      inv_count):
    j = pl.program_id(1)

    @pl.when(j == 0)
    def _():
        acc_ref[...] = jnp.zeros_like(acc_ref)

    mean = mean_ref[...]
    disp = disp_ref[...]
    pi = pi_ref[...]

    # pow(d/(d+m+eps), d) = exp(d * (log(d+eps) - log(d+m+eps))): division-free;
    # the extra eps in the numerator perturbs the result by <= a factor e^eps.
    log_ratio = jnp.log(disp + _EPS) - jnp.log(disp + mean + _EPS)
    zero_nb = jnp.exp(disp * log_ratio)
    zero_case = -jnp.log(pi + (1.0 - pi) * zero_nb + _EPS)
    zero_case = _maybe_mask(zero_case, blocks_per_chunk=blocks_per_chunk,
                            tile_rows=tile_rows, n_valid=n_valid,
                            g_valid=g_valid, g_pad=g_pad)

    acc_ref[...] += zero_case

    @pl.when(j == blocks_per_chunk - 1)
    def _():
        _store_partial(out_ref, acc_ref, inv_count)


# --------------------------------- wrapper -----------------------------------
def _choose_tile_rows(n_rows, g_pad, n_arrays, *, budget_bytes=16 << 20, cap=1024):
    # 2 pipeline buffers per input + 1 full-block accumulator scratch.
    per_row = (2 * n_arrays + 1) * g_pad * 4
    t = max(8, min(cap, budget_bytes // per_row))
    t = (t // 8) * 8
    n8 = ((n_rows + 7) // 8) * 8
    return max(8, min(t, n8))


def zinb_loss(mean, disp, pi, x=None, *, tile_rows=None):
    """Pallas equivalent of ZINBLoss.forward with eps=1e-10. Returns a scalar."""
    mean = jnp.asarray(mean, jnp.float32)
    disp = jnp.asarray(disp, jnp.float32)
    pi = jnp.asarray(pi, jnp.float32)
    if x is not None:
        x = jnp.asarray(x, jnp.float32)

    n, g = mean.shape
    n_arrays = 3 if x is None else 4
    g_pad = ((g + 127) // 128) * 128                      # lane-dense last dim

    if tile_rows is None:
        tile_rows = _choose_tile_rows(n, g_pad, n_arrays)
    tile_rows = max(8, (int(tile_rows) // 8) * 8)

    n_pad = ((n + tile_rows - 1) // tile_rows) * tile_rows
    num_blocks = n_pad // tile_rows
    # Leading "parallel" axis: lets v7x's two TensorCores split the work
    # (no-op on v5e/v6e).  Each chunk produces an independent partial sum.
    num_chunks = 2 if (num_blocks >= 2 and num_blocks % 2 == 0) else 1
    blocks_per_chunk = num_blocks // num_chunks

    def _pad(a):
        if n_pad == n and g_pad == g:
            return a
        return jnp.pad(a, ((0, n_pad - n), (0, g_pad - g)))

    inv_count = float(1.0 / (n * g))
    common = dict(blocks_per_chunk=blocks_per_chunk, tile_rows=tile_rows,
                  n_valid=n, g_valid=g, g_pad=g_pad, inv_count=inv_count)

    if x is None:
        kernel = functools.partial(_zero_case_kernel, **common)
        args = (_pad(mean), _pad(disp), _pad(pi))
    else:
        kernel = functools.partial(_nb_case_kernel, **common)
        args = (_pad(mean), _pad(disp), _pad(pi), _pad(x))

    in_spec = pl.BlockSpec(
        (tile_rows, g_pad),
        lambda p, j: (p * blocks_per_chunk + j, 0))
    out_spec = pl.BlockSpec((1, 8, 128), lambda p, j: (p, 0, 0))

    out = pl.pallas_call(
        kernel,
        out_shape=jax.ShapeDtypeStruct((num_chunks, 8, 128), jnp.float32),
        grid_spec=pltpu.PrefetchScalarGridSpec(
            num_scalar_prefetch=0,
            grid=(num_chunks, blocks_per_chunk),
            in_specs=[in_spec] * n_arrays,
            out_specs=out_spec,
            scratch_shapes=[pltpu.VMEM((tile_rows, g_pad), jnp.float32)],
        ),
        compiler_params=pltpu.CompilerParams(
            dimension_semantics=("parallel", "arbitrary"),
            vmem_limit_bytes=40 * 1024 * 1024,
        ),
    )(*args)
    # Each chunk wrote its (already inv_count-scaled) partial into one lane.
    return jnp.sum(out)


# -------------------------------- reference ----------------------------------
def _zinb_loss_ref(mean, disp, pi, x=None, eps=_EPS):
    """Pure-JAX reference mirroring the PyTorch module."""
    if x is None:
        zero_nb = jnp.power(disp / (disp + mean + eps), disp)
        zero_case = -jnp.log(pi + (1.0 - pi) * zero_nb + eps)
        return jnp.mean(zero_case)
    t1 = (jax.scipy.special.gammaln(disp + eps)
          + jax.scipy.special.gammaln(x + 1.0)
          - jax.scipy.special.gammaln(x + disp + eps))
    t2 = (disp + x) * jnp.log(1.0 + mean / (disp + eps)) + x * (
        jnp.log(disp + eps) - jnp.log(mean + eps))
    nb_case = (t1 + t2) - jnp.log(1.0 - pi + eps)
    return jnp.mean(nb_case)


if __name__ == "__main__":
    key = jax.random.PRNGKey(0)

    def make_inputs(n, g, key):
        k_mean, k_disp, k_pi, k_x = jax.random.split(key, 4)
        mean = jnp.exp(0.5 * jax.random.normal(k_mean, (n, g), jnp.float32)) * 2.0
        disp = jnp.exp(0.3 * jax.random.normal(k_disp, (n, g), jnp.float32))
        pi = jax.nn.sigmoid(jax.random.normal(k_pi, (n, g), jnp.float32))
        x = jnp.floor(jnp.exp(jax.random.normal(k_x, (n, g), jnp.float32)))
        return mean, disp, pi, x

    # Aligned small shape (cells, genes).
    k0, k1 = jax.random.split(key)
    mean, disp, pi, x = make_inputs(16, 256, k0)
    loss_nb = zinb_loss(mean, disp, pi, x)          # observed counts (NB case)
    loss_zero = zinb_loss(mean, disp, pi, None)     # x=None (zero-inflation case)

    # Ragged shape: exercises the lane/row padding + in-kernel masking path.
    mean_r, disp_r, pi_r, x_r = make_inputs(10, 200, k1)
    loss_nb_r = zinb_loss(mean_r, disp_r, pi_r, x_r)
    loss_zero_r = zinb_loss(mean_r, disp_r, pi_r, None)

    jax.block_until_ready((loss_nb, loss_zero, loss_nb_r, loss_zero_r))

    # Silent correctness checks against the pure-JAX reference.
    assert jnp.allclose(loss_nb, _zinb_loss_ref(mean, disp, pi, x),
                        rtol=1e-2, atol=1e-2)
    assert jnp.allclose(loss_zero, _zinb_loss_ref(mean, disp, pi, None),
                        rtol=1e-2, atol=1e-2)
    assert jnp.allclose(loss_nb_r, _zinb_loss_ref(mean_r, disp_r, pi_r, x_r),
                        rtol=1e-2, atol=1e-2)
    assert jnp.allclose(loss_zero_r, _zinb_loss_ref(mean_r, disp_r, pi_r, None),
                        rtol=1e-2, atol=1e-2)

    print("KERNEL_OK")
</pallas_src>

<mosaic_0001>
module attributes {stable_mosaic.version = 11 : i64} {
  func.func @_nb_case_kernel(%arg0: i32, %arg1: i32, %arg2: memref<16x256xf32, #tpu.memory_space<vmem>>, %arg3: memref<16x256xf32, #tpu.memory_space<vmem>>, %arg4: memref<16x256xf32, #tpu.memory_space<vmem>>, %arg5: memref<16x256xf32, #tpu.memory_space<vmem>>, %arg6: memref<1x8x128xf32, #tpu.memory_space<vmem>>, %arg7: memref<16x256xf32, #tpu.memory_space<vmem>>) attributes {dimension_semantics = [#tpu.dimension_semantics<parallel>, #tpu.dimension_semantics<arbitrary>], iteration_bounds = array<i64: 1, 1>, scalar_prefetch = 0 : i64, scratch_operands = 1 : i64, tpu.core_type = #tpu.core_type<tc>, window_params = [{transform_indices = @transform_0, window_bounds = array<i64: 16, 256>}, {transform_indices = @transform_1, window_bounds = array<i64: 16, 256>}, {transform_indices = @transform_2, window_bounds = array<i64: 16, 256>}, {transform_indices = @transform_3, window_bounds = array<i64: 16, 256>}, {transform_indices = @transform_4, window_bounds = array<i64: 1, 8, 128>}]} {
    %c0_i32 = arith.constant 0 : i32
    %0 = arith.cmpi eq, %arg1, %c0_i32 : i32
    %1 = arith.extui %0 : i1 to i32
    %c0_i32_0 = arith.constant 0 : i32
    %2 = arith.cmpi ne, %1, %c0_i32_0 : i32
    scf.if %2 {
      %cst_82 = arith.constant 0.000000e+00 : f32
      %226 = vector.broadcast %cst_82 : f32 to vector<16x256xf32>
      %c0_83 = arith.constant 0 : index
      %c0_84 = arith.constant 0 : index
      %227 = vector.load %arg7[%c0_83, %c0_84] : memref<16x256xf32, #tpu.memory_space<vmem>>, vector<16x256xf32>
      tpu.vector_store %arg7[%c0_83, %c0_84], %226 {strides = array<i32>} : memref<16x256xf32, #tpu.memory_space<vmem>>, vector<16x256xf32>,
    } else {
    }
    %c0 = arith.constant 0 : index
    %c0_1 = arith.constant 0 : index
    %3 = vector.load %arg2[%c0, %c0_1] : memref<16x256xf32, #tpu.memory_space<vmem>>, vector<16x256xf32>
    %c0_2 = arith.constant 0 : index
    %c0_3 = arith.constant 0 : index
    %4 = vector.load %arg3[%c0_2, %c0_3] : memref<16x256xf32, #tpu.memory_space<vmem>>, vector<16x256xf32>
    %c0_4 = arith.constant 0 : index
    %c0_5 = arith.constant 0 : index
    %5 = vector.load %arg4[%c0_4, %c0_5] : memref<16x256xf32, #tpu.memory_space<vmem>>, vector<16x256xf32>
    %c0_6 = arith.constant 0 : index
    %c0_7 = arith.constant 0 : index
    %6 = vector.load %arg5[%c0_6, %c0_7] : memref<16x256xf32, #tpu.memory_space<vmem>>, vector<16x256xf32>
    %cst = arith.constant 1.000000e-10 : f32
    %7 = vector.broadcast %cst : f32 to vector<16x256xf32>
    %8 = arith.addf %4, %7 : vector<16x256xf32>
    %9 = math.log %8 : vector<16x256xf32>
    %cst_8 = arith.constant 1.000000e-10 : f32
    %10 = vector.broadcast %cst_8 : f32 to vector<16x256xf32>
    %11 = arith.addf %3, %10 : vector<16x256xf32>
    %12 = math.log %11 : vector<16x256xf32>
    %13 = arith.addf %4, %3 : vector<16x256xf32>
    %cst_9 = arith.constant 1.000000e-10 : f32
    %14 = vector.broadcast %cst_9 : f32 to vector<16x256xf32>
    %15 = arith.addf %13, %14 : vector<16x256xf32>
    %16 = math.log %15 : vector<16x256xf32>
    %17 = arith.addf %4, %6 : vector<16x256xf32>
    %18 = arith.subf %16, %9 : vector<16x256xf32>
    %19 = arith.mulf %17, %18 : vector<16x256xf32>
    %20 = arith.subf %9, %12 : vector<16x256xf32>
    %21 = arith.mulf %6, %20 : vector<16x256xf32>
    %22 = arith.addf %19, %21 : vector<16x256xf32>
    %cst_10 = arith.constant 1.000000e-10 : f32
    %23 = vector.broadcast %cst_10 : f32 to vector<16x256xf32>
    %24 = arith.addf %4, %23 : vector<16x256xf32>
    %cst_11 = arith.constant 1.000000e+00 : f32
    %25 = vector.broadcast %cst_11 : f32 to vector<16x256xf32>
    %26 = arith.addf %6, %25 : vector<16x256xf32>
    %27 = arith.addf %6, %4 : vector<16x256xf32>
    %cst_12 = arith.constant 1.000000e-10 : f32
    %28 = vector.broadcast %cst_12 : f32 to vector<16x256xf32>
    %29 = arith.addf %27, %28 : vector<16x256xf32>
    %cst_13 = arith.constant 4.000000e+04 : f32
    %30 = vector.broadcast %cst_13 : f32 to vector<16x256xf32>
    %31 = arith.minimumf %24, %30 : vector<16x256xf32>
    %cst_14 = arith.constant 1.000000e+00 : f32
    %32 = vector.broadcast %cst_14 : f32 to vector<16x256xf32>
    %33 = arith.subf %31, %32 : vector<16x256xf32>
    %cst_15 = arith.constant 1.000000e+00 : f32
    %34 = vector.broadcast %cst_15 : f32 to vector<16x256xf32>
    %35 = arith.addf %31, %34 : vector<16x256xf32>
    %36 = arith.mulf %31, %35 : vector<16x256xf32>
    %cst_16 = arith.constant 2.000000e+00 : f32
    %37 = vector.broadcast %cst_16 : f32 to vector<16x256xf32>
    %38 = arith.addf %31, %37 : vector<16x256xf32>
    %39 = arith.mulf %36, %38 : vector<16x256xf32>
    %cst_17 = arith.constant 3.000000e+00 : f32
    %40 = vector.broadcast %cst_17 : f32 to vector<16x256xf32>
    %41 = arith.addf %31, %40 : vector<16x256xf32>
    %42 = arith.mulf %39, %41 : vector<16x256xf32>
    %cst_18 = arith.constant 4.000000e+00 : f32
    %43 = vector.broadcast %cst_18 : f32 to vector<16x256xf32>
    %44 = arith.addf %31, %43 : vector<16x256xf32>
    %45 = arith.mulf %42, %44 : vector<16x256xf32>
    %cst_19 = arith.constant 5.000000e+00 : f32
    %46 = vector.broadcast %cst_19 : f32 to vector<16x256xf32>
    %47 = arith.addf %31, %46 : vector<16x256xf32>
    %48 = arith.mulf %45, %47 : vector<16x256xf32>
    %cst_20 = arith.constant 6.000000e+00 : f32
    %49 = vector.broadcast %cst_20 : f32 to vector<16x256xf32>
    %50 = arith.addf %31, %49 : vector<16x256xf32>
    %51 = arith.mulf %48, %50 : vector<16x256xf32>
    %cst_21 = arith.constant 7.000000e+00 : f32
    %52 = vector.broadcast %cst_21 : f32 to vector<16x256xf32>
    %53 = arith.addf %31, %52 : vector<16x256xf32>
    %54 = arith.mulf %51, %53 : vector<16x256xf32>
    %cst_22 = arith.constant 1.000000e+00 : f32
    %55 = vector.broadcast %cst_22 : f32 to vector<16x256xf32>
    %56 = arith.mulf %55, %33 : vector<16x256xf32>
    %cst_23 = arith.constant 60.4583321 : f32
    %57 = vector.broadcast %cst_23 : f32 to vector<16x256xf32>
    %58 = arith.addf %56, %57 : vector<16x256xf32>
    %59 = arith.mulf %58, %33 : vector<16x256xf32>
    %cst_24 = arith.constant 1599.04248 : f32
    %60 = vector.broadcast %cst_24 : f32 to vector<16x256xf32>
    %61 = arith.addf %59, %60 : vector<16x256xf32>
    %62 = arith.mulf %61, %33 : vector<16x256xf32>
    %cst_25 = arith.constant 24165.5098 : f32
    %63 = vector.broadcast %cst_25 : f32 to vector<16x256xf32>
    %64 = arith.addf %62, %63 : vector<16x256xf32>
    %65 = arith.mulf %64, %33 : vector<16x256xf32>
    %cst_26 = arith.constant 228235.219 : f32
    %66 = vector.broadcast %cst_26 : f32 to vector<16x256xf32>
    %67 = arith.addf %65, %66 : vector<16x256xf32>
    %68 = arith.mulf %67, %33 : vector<16x256xf32>
    %cst_27 = arith.constant 1379496.25 : f32
    %69 = vector.broadcast %cst_27 : f32 to vector<16x256xf32>
    %70 = arith.addf %68, %69 : vector<16x256xf32>
    %71 = arith.mulf %70, %33 : vector<16x256xf32>
    %cst_28 = arith.constant 0x4A9F05EA : f32
    %72 = vector.broadcast %cst_28 : f32 to vector<16x256xf32>
    %73 = arith.addf %71, %72 : vector<16x256xf32>
    %74 = arith.mulf %73, %33 : vector<16x256xf32>
    %cst_29 = arith.constant 0x4B2B9D51 : f32
    %75 = vector.broadcast %cst_29 : f32 to vector<16x256xf32>
    %76 = arith.addf %74, %75 : vector<16x256xf32>
    %77 = arith.mulf %76, %33 : vector<16x256xf32>
    %cst_30 = arith.constant 0x4B220ADA : f32
    %78 = vector.broadcast %cst_30 : f32 to vector<16x256xf32>
    %79 = arith.addf %77, %78 : vector<16x256xf32>
    %80 = tpu.reciprocal %54 {approx = true} : vector<16x256xf32> -> vector<16x256xf32>
    %81 = arith.mulf %79, %80 : vector<16x256xf32>
    %cst_31 = arith.constant 4.000000e+04 : f32
    %82 = vector.broadcast %cst_31 : f32 to vector<16x256xf32>
    %83 = arith.minimumf %26, %82 : vector<16x256xf32>
    %cst_32 = arith.constant 1.000000e+00 : f32
    %84 = vector.broadcast %cst_32 : f32 to vector<16x256xf32>
    %85 = arith.subf %83, %84 : vector<16x256xf32>
    %cst_33 = arith.constant 1.000000e+00 : f32
    %86 = vector.broadcast %cst_33 : f32 to vector<16x256xf32>
    %87 = arith.addf %83, %86 : vector<16x256xf32>
    %88 = arith.mulf %83, %87 : vector<16x256xf32>
    %cst_34 = arith.constant 2.000000e+00 : f32
    %89 = vector.broadcast %cst_34 : f32 to vector<16x256xf32>
    %90 = arith.addf %83, %89 : vector<16x256xf32>
    %91 = arith.mulf %88, %90 : vector<16x256xf32>
    %cst_35 = arith.constant 3.000000e+00 : f32
    %92 = vector.broadcast %cst_35 : f32 to vector<16x256xf32>
    %93 = arith.addf %83, %92 : vector<16x256xf32>
    %94 = arith.mulf %91, %93 : vector<16x256xf32>
    %cst_36 = arith.constant 4.000000e+00 : f32
    %95 = vector.broadcast %cst_36 : f32 to vector<16x256xf32>
    %96 = arith.addf %83, %95 : vector<16x256xf32>
    %97 = arith.mulf %94, %96 : vector<16x256xf32>
    %cst_37 = arith.constant 5.000000e+00 : f32
    %98 = vector.broadcast %cst_37 : f32 to vector<16x256xf32>
    %99 = arith.addf %83, %98 : vector<16x256xf32>
    %100 = arith.mulf %97, %99 : vector<16x256xf32>
    %cst_38 = arith.constant 6.000000e+00 : f32
    %101 = vector.broadcast %cst_38 : f32 to vector<16x256xf32>
    %102 = arith.addf %83, %101 : vector<16x256xf32>
    %103 = arith.mulf %100, %102 : vector<16x256xf32>
    %cst_39 = arith.constant 7.000000e+00 : f32
    %104 = vector.broadcast %cst_39 : f32 to vector<16x256xf32>
    %105 = arith.addf %83, %104 : vector<16x256xf32>
    %106 = arith.mulf %103, %105 : vector<16x256xf32>
    %cst_40 = arith.constant 1.000000e+00 : f32
    %107 = vector.broadcast %cst_40 : f32 to vector<16x256xf32>
    %108 = arith.mulf %107, %85 : vector<16x256xf32>
    %cst_41 = arith.constant 60.4583321 : f32
    %109 = vector.broadcast %cst_41 : f32 to vector<16x256xf32>
    %110 = arith.addf %108, %109 : vector<16x256xf32>
    %111 = arith.mulf %110, %85 : vector<16x256xf32>
    %cst_42 = arith.constant 1599.04248 : f32
    %112 = vector.broadcast %cst_42 : f32 to vector<16x256xf32>
    %113 = arith.addf %111, %112 : vector<16x256xf32>
    %114 = arith.mulf %113, %85 : vector<16x256xf32>
    %cst_43 = arith.constant 24165.5098 : f32
    %115 = vector.broadcast %cst_43 : f32 to vector<16x256xf32>
    %116 = arith.addf %114, %115 : vector<16x256xf32>
    %117 = arith.mulf %116, %85 : vector<16x256xf32>
    %cst_44 = arith.constant 228235.219 : f32
    %118 = vector.broadcast %cst_44 : f32 to vector<16x256xf32>
    %119 = arith.addf %117, %118 : vector<16x256xf32>
    %120 = arith.mulf %119, %85 : vector<16x256xf32>
    %cst_45 = arith.constant 1379496.25 : f32
    %121 = vector.broadcast %cst_45 : f32 to vector<16x256xf32>
    %122 = arith.addf %120, %121 : vector<16x256xf32>
    %123 = arith.mulf %122, %85 : vector<16x256xf32>
    %cst_46 = arith.constant 0x4A9F05EA : f32
    %124 = vector.broadcast %cst_46 : f32 to vector<16x256xf32>
    %125 = arith.addf %123, %124 : vector<16x256xf32>
    %126 = arith.mulf %125, %85 : vector<16x256xf32>
    %cst_47 = arith.constant 0x4B2B9D51 : f32
    %127 = vector.broadcast %cst_47 : f32 to vector<16x256xf32>
    %128 = arith.addf %126, %127 : vector<16x256xf32>
    %129 = arith.mulf %128, %85 : vector<16x256xf32>
    %cst_48 = arith.constant 0x4B220ADA : f32
    %130 = vector.broadcast %cst_48 : f32 to vector<16x256xf32>
    %131 = arith.addf %129, %130 : vector<16x256xf32>
    %132 = tpu.reciprocal %106 {approx = true} : vector<16x256xf32> -> vector<16x256xf32>
    %133 = arith.mulf %131, %132 : vector<16x256xf32>
    %cst_49 = arith.constant 4.000000e+04 : f32
    %134 = vector.broadcast %cst_49 : f32 to vector<16x256xf32>
    %135 = arith.minimumf %29, %134 : vector<16x256xf32>
    %cst_50 = arith.constant 1.000000e+00 : f32
    %136 = vector.broadcast %cst_50 : f32 to vector<16x256xf32>
    %137 = arith.subf %135, %136 : vector<16x256xf32>
    %cst_51 = arith.constant 1.000000e+00 : f32
    %138 = vector.broadcast %cst_51 : f32 to vector<16x256xf32>
    %139 = arith.addf %135, %138 : vector<16x256xf32>
    %140 = arith.mulf %135, %139 : vector<16x256xf32>
    %cst_52 = arith.constant 2.000000e+00 : f32
    %141 = vector.broadcast %cst_52 : f32 to vector<16x256xf32>
    %142 = arith.addf %135, %141 : vector<16x256xf32>
    %143 = arith.mulf %140, %142 : vector<16x256xf32>
    %cst_53 = arith.constant 3.000000e+00 : f32
    %144 = vector.broadcast %cst_53 : f32 to vector<16x256xf32>
    %145 = arith.addf %135, %144 : vector<16x256xf32>
    %146 = arith.mulf %143, %145 : vector<16x256xf32>
    %cst_54 = arith.constant 4.000000e+00 : f32
    %147 = vector.broadcast %cst_54 : f32 to vector<16x256xf32>
    %148 = arith.addf %135, %147 : vector<16x256xf32>
    %149 = arith.mulf %146, %148 : vector<16x256xf32>
    %cst_55 = arith.constant 5.000000e+00 : f32
    %150 = vector.broadcast %cst_55 : f32 to vector<16x256xf32>
    %151 = arith.addf %135, %150 : vector<16x256xf32>
    %152 = arith.mulf %149, %151 : vector<16x256xf32>
    %cst_56 = arith.constant 6.000000e+00 : f32
    %153 = vector.broadcast %cst_56 : f32 to vector<16x256xf32>
    %154 = arith.addf %135, %153 : vector<16x256xf32>
    %155 = arith.mulf %152, %154 : vector<16x256xf32>
    %cst_57 = arith.constant 7.000000e+00 : f32
    %156 = vector.broadcast %cst_57 : f32 to vector<16x256xf32>
    %157 = arith.addf %135, %156 : vector<16x256xf32>
    %158 = arith.mulf %155, %157 : vector<16x256xf32>
    %cst_58 = arith.constant 1.000000e+00 : f32
    %159 = vector.broadcast %cst_58 : f32 to vector<16x256xf32>
    %160 = arith.mulf %159, %137 : vector<16x256xf32>
    %cst_59 = arith.constant 60.4583321 : f32
    %161 = vector.broadcast %cst_59 : f32 to vector<16x256xf32>
    %162 = arith.addf %160, %161 : vector<16x256xf32>
    %163 = arith.mulf %162, %137 : vector<16x256xf32>
    %cst_60 = arith.constant 1599.04248 : f32
    %164 = vector.broadcast %cst_60 : f32 to vector<16x256xf32>
    %165 = arith.addf %163, %164 : vector<16x256xf32>
    %166 = arith.mulf %165, %137 : vector<16x256xf32>
    %cst_61 = arith.constant 24165.5098 : f32
    %167 = vector.broadcast %cst_61 : f32 to vector<16x256xf32>
    %168 = arith.addf %166, %167 : vector<16x256xf32>
    %169 = arith.mulf %168, %137 : vector<16x256xf32>
    %cst_62 = arith.constant 228235.219 : f32
    %170 = vector.broadcast %cst_62 : f32 to vector<16x256xf32>
    %171 = arith.addf %169, %170 : vector<16x256xf32>
    %172 = arith.mulf %171, %137 : vector<16x256xf32>
    %cst_63 = arith.constant 1379496.25 : f32
    %173 = vector.broadcast %cst_63 : f32 to vector<16x256xf32>
    %174 = arith.addf %172, %173 : vector<16x256xf32>
    %175 = arith.mulf %174, %137 : vector<16x256xf32>
    %cst_64 = arith.constant 0x4A9F05EA : f32
    %176 = vector.broadcast %cst_64 : f32 to vector<16x256xf32>
    %177 = arith.addf %175, %176 : vector<16x256xf32>
    %178 = arith.mulf %177, %137 : vector<16x256xf32>
    %cst_65 = arith.constant 0x4B2B9D51 : f32
    %179 = vector.broadcast %cst_65 : f32 to vector<16x256xf32>
    %180 = arith.addf %178, %179 : vector<16x256xf32>
    %181 = arith.mulf %180, %137 : vector<16x256xf32>
    %cst_66 = arith.constant 0x4B220ADA : f32
    %182 = vector.broadcast %cst_66 : f32 to vector<16x256xf32>
    %183 = arith.addf %181, %182 : vector<16x256xf32>
    %184 = tpu.reciprocal %158 {approx = true} : vector<16x256xf32> -> vector<16x256xf32>
    %185 = arith.mulf %183, %184 : vector<16x256xf32>
    %cst_67 = arith.constant 5.000000e-01 : f32
    %186 = vector.broadcast %cst_67 : f32 to vector<16x256xf32>
    %187 = arith.subf %24, %186 : vector<16x256xf32>
    %cst_68 = arith.constant 6.500000e+00 : f32
    %188 = vector.broadcast %cst_68 : f32 to vector<16x256xf32>
    %189 = arith.addf %24, %188 : vector<16x256xf32>
    %190 = math.log %189 : vector<16x256xf32>
    %191 = arith.mulf %187, %190 : vector<16x256xf32>
    %cst_69 = arith.constant -6.58106136 : f32
    %192 = vector.broadcast %cst_69 : f32 to vector<16x256xf32>
    %193 = arith.addf %192, %191 : vector<16x256xf32>
    %cst_70 = arith.constant 5.000000e-01 : f32
    %194 = vector.broadcast %cst_70 : f32 to vector<16x256xf32>
    %195 = arith.subf %26, %194 : vector<16x256xf32>
    %cst_71 = arith.constant 6.500000e+00 : f32
    %196 = vector.broadcast %cst_71 : f32 to vector<16x256xf32>
    %197 = arith.addf %26, %196 : vector<16x256xf32>
    %198 = math.log %197 : vector<16x256xf32>
    %199 = arith.mulf %195, %198 : vector<16x256xf32>
    %200 = arith.addf %193, %199 : vector<16x256xf32>
    %cst_72 = arith.constant 5.000000e-01 : f32
    %201 = vector.broadcast %cst_72 : f32 to vector<16x256xf32>
    %202 = arith.subf %29, %201 : vector<16x256xf32>
    %cst_73 = arith.constant 6.500000e+00 : f32
    %203 = vector.broadcast %cst_73 : f32 to vector<16x256xf32>
    %204 = arith.addf %29, %203 : vector<16x256xf32>
    %205 = math.log %204 : vector<16x256xf32>
    %206 = arith.mulf %202, %205 : vector<16x256xf32>
    %207 = arith.subf %200, %206 : vector<16x256xf32>
    %208 = arith.mulf %81, %133 : vector<16x256xf32>
    %209 = tpu.reciprocal %185 {approx = true} : vector<16x256xf32> -> vector<16x256xf32>
    %210 = arith.mulf %208, %209 : vector<16x256xf32>
    %211 = math.log %210 : vector<16x256xf32>
    %212 = arith.addf %207, %211 : vector<16x256xf32>
    %213 = arith.addf %212, %22 : vector<16x256xf32>
    %cst_74 = arith.constant 1.000000e+00 : f32
    %214 = vector.broadcast %cst_74 : f32 to vector<16x256xf32>
    %215 = arith.subf %214, %5 : vector<16x256xf32>
    %cst_75 = arith.constant 1.000000e-10 : f32
    %216 = vector.broadcast %cst_75 : f32 to vector<16x256xf32>
    %217 = arith.addf %215, %216 : vector<16x256xf32>
    %218 = math.log %217 : vector<16x256xf32>
    %219 = arith.subf %213, %218 : vector<16x256xf32>
    %c0_76 = arith.constant 0 : index
    %c0_77 = arith.constant 0 : index
    %220 = vector.load %arg7[%c0_76, %c0_77] : memref<16x256xf32, #tpu.memory_space<vmem>>, vector<16x256xf32>
    %221 = arith.addf %220, %219 : vector<16x256xf32>
    %c0_78 = arith.constant 0 : index
    %c0_79 = arith.constant 0 : index
    %222 = vector.load %arg7[%c0_78, %c0_79] : memref<16x256xf32, #tpu.memory_space<vmem>>, vector<16x256xf32>
    tpu.vector_store %arg7[%c0_78, %c0_79], %221 {strides = array<i32>} : memref<16x256xf32, #tpu.memory_space<vmem>>, vector<16x256xf32>,
    %c0_i32_80 = arith.constant 0 : i32
    %223 = arith.cmpi eq, %arg1, %c0_i32_80 : i32
    %224 = arith.extui %223 : i1 to i32
    %c0_i32_81 = arith.constant 0 : i32
    %225 = arith.cmpi ne, %224, %c0_i32_81 : i32
    scf.if %225 {
      %c0_82 = arith.constant 0 : index
      %c0_83 = arith.constant 0 : index
      %226 = vector.load %arg7[%c0_82, %c0_83] : memref<16x256xf32, #tpu.memory_space<vmem>>, vector<16x256xf32>
      %227 = vector.shape_cast %226 : vector<16x256xf32> to vector<1x16x256xf32>
      %cst_84 = arith.constant dense<0.000000e+00> : vector<1xf32>
      %228 = vector.multi_reduction <add>, %227, %cst_84 [1, 2] : vector<1x16x256xf32> to vector<1xf32>
      %229 = vector.shape_cast %228 : vector<1xf32> to vector<1x1x1xf32>
      %230 = vector.extract %229[0, 0, 0] : f32 from vector<1x1x1xf32>
      %cst_85 = arith.constant 2.44140625E-4 : f32
      %231 = arith.mulf %230, %cst_85 : f32
      %232 = tpu.iota {dimensions = array<i32: 1>} : vector<1x8x128xi32>
      %233 = tpu.iota {dimensions = array<i32: 2>} : vector<1x8x128xi32>
      %c0_i32_86 = arith.constant 0 : i32
      %234 = vector.broadcast %c0_i32_86 : i32 to vector<1x8x128xi32>
      %235 = arith.cmpi eq, %232, %234 : vector<1x8x128xi32>
      %c0_i32_87 = arith.constant 0 : i32
      %236 = vector.broadcast %c0_i32_87 : i32 to vector<1x8x128xi32>
      %237 = arith.cmpi eq, %233, %236 : vector<1x8x128xi32>
      %238 = arith.andi %235, %237 : vector<1x8x128xi1>
      %cst_88 = arith.constant 0.000000e+00 : f32
      %239 = vector.broadcast %231 : f32 to vector<1x8x128xf32>
      %240 = vector.broadcast %cst_88 : f32 to vector<1x8x128xf32>
      %241 = arith.select %238, %239, %240 : vector<1x8x128xi1>, vector<1x8x128xf32>
      %c0_89 = arith.constant 0 : index
      %c0_90 = arith.constant 0 : index
      %c0_91 = arith.constant 0 : index
      %242 = vector.load %arg6[%c0_89, %c0_90, %c0_91] : memref<1x8x128xf32, #tpu.memory_space<vmem>>, vector<1x8x128xf32>
      tpu.vector_store %arg6[%c0_89, %c0_90, %c0_91], %241 {strides = array<i32>} : memref<1x8x128xf32, #tpu.memory_space<vmem>>, vector<1x8x128xf32>,
    } else {
    }
    return
  }
  func.func @transform_0(%arg0: i32, %arg1: i32) -> (i32, i32) {
    %c1_i32 = arith.constant 1 : i32
    %0 = arith.muli %arg0, %c1_i32 : i32
    %1 = arith.addi %0, %arg1 : i32
    %c0_i32 = arith.constant 0 : i32
    %c0_i32_0 = arith.constant 0 : i32
    return %1, %c0_i32 : i32, i32
  }
  func.func @transform_1(%arg0: i32, %arg1: i32) -> (i32, i32) {
    %c1_i32 = arith.constant 1 : i32
    %0 = arith.muli %arg0, %c1_i32 : i32
    %1 = arith.addi %0, %arg1 : i32
    %c0_i32 = arith.constant 0 : i32
    %c0_i32_0 = arith.constant 0 : i32
    return %1, %c0_i32 : i32, i32
  }
  func.func @transform_2(%arg0: i32, %arg1: i32) -> (i32, i32) {
    %c1_i32 = arith.constant 1 : i32
    %0 = arith.muli %arg0, %c1_i32 : i32
    %1 = arith.addi %0, %arg1 : i32
    %c0_i32 = arith.constant 0 : i32
    %c0_i32_0 = arith.constant 0 : i32
    return %1, %c0_i32 : i32, i32
  }
  func.func @transform_3(%arg0: i32, %arg1: i32) -> (i32, i32) {
    %c1_i32 = arith.constant 1 : i32
    %0 = arith.muli %arg0, %c1_i32 : i32
    %1 = arith.addi %0, %arg1 : i32
    %c0_i32 = arith.constant 0 : i32
    %c0_i32_0 = arith.constant 0 : i32
    return %1, %c0_i32 : i32, i32
  }
  func.func @transform_4(%arg0: i32, %arg1: i32) -> (i32, i32, i32) {
    %c0_i32 = arith.constant 0 : i32
    %c0_i32_0 = arith.constant 0 : i32
    %c0_i32_1 = arith.constant 0 : i32
    return %arg0, %c0_i32, %c0_i32_0 : i32, i32, i32
  }
}

</mosaic_0001>

<llo_original>
// kernel: tpu_custom_call.1
$region0: #{tpu_custom_call.1}
  #allocation0 [shape = 'u32[]', space=smem, size = 0x4, offset = 0x4, fixed_abs, tag = 'smem constant byte address 0x4 - core index']
  #allocation1 [shape = 'u32[144,128]{1,0:T(1,128)}', space=vmem, size = 0x12000, scoped, tag = 'internal scratch']
  #allocation2 [shape = 'f32[16,256]{1,0:T(8,128)}', space=vmem, size = 0x4000, scoped, tag = 'scratch operand']
  %s0 = inlined_call_operand.hbm [shape: f32[16,256], index: 0, kind: input, shape index: {}]
  %s1 = inlined_call_operand.hbm [shape: f32[16,256], index: 1, kind: input, shape index: {}]
  %s2 = inlined_call_operand.hbm [shape: f32[16,256], index: 2, kind: input, shape index: {}]
  %s3 = inlined_call_operand.hbm [shape: f32[16,256], index: 3, kind: input, shape index: {}]
  %s4 = inlined_call_operand.hbm [shape: f32[1,8,128], index: 4, kind: output, shape index: {}]
  %s5 = sld [smem:[#allocation0]]
  $region50: #{tpu_custom_call.1} parent=0
    _
  %s7 = ssub.s32 1, %s5
  %s8 = scalar_select 0, %s7, %s5
  $region1: #{tpu_custom_call.1} parent=0
    #allocation3 [shape = 'u8[16384]{0}', space=vmem, size = 0x4000, scoped, tag = 'input window, operand 0, single buffered']
    #allocation4 [shape = 's32[1]{0}', space=sflag, size = 0x4, scoped, tag = 'scoped memory for tpu_custom_call.1']
    #allocation5 [shape = 's32[1]{0}', space=sflag, size = 0x4, scoped, tag = 'scoped memory for tpu_custom_call.1']
    #allocation6 [shape = 'u8[16384]{0}', space=vmem, size = 0x4000, scoped, tag = 'input window, operand 1, single buffered']
    #allocation7 [shape = 's32[1]{0}', space=sflag, size = 0x4, scoped, tag = 'scoped memory for tpu_custom_call.1']
    #allocation8 [shape = 'u8[16384]{0}', space=vmem, size = 0x4000, scoped, tag = 'input window, operand 2, single buffered']
    #allocation9 [shape = 'u8[16384]{0}', space=vmem, size = 0x4000, scoped, tag = 'input window, operand 3, single buffered']
    #allocation10 [shape = 's32[1]{0}', space=sflag, size = 0x4, scoped, tag = 'scoped memory for tpu_custom_call.1']
    #allocation11 [shape = 'u8[4096]{0}', space=vmem, size = 0x1000, scoped, tag = 'output window, operand 0, single buffered']
    %9 = vsyncpa [#allocation4], 0
    %10 = vsyncpa [#allocation7], 0
    %11 = vsyncpa [#allocation10], 0
    %12 = vsyncpa [#allocation5], 0
    // Predicated region
    $region2: #{tpu_custom_call.1} parent=1 // pred_check
      _
    $region3: #{tpu_custom_call.1} parent=1 // pred_check_branch
      %14 = sbr.rel (0) target = $region5
    $region4: #{tpu_custom_call.1} parent=1 // pred_region
      %s15 = sadd.s32 0, 0
      %s16 = smul.u32 2, %s15
      %s18 = ssub.s32 512, 512
      %19 = vsyncadd [#allocation4], %s18
      %s20 = smul.addr %s16, 2
      %s21 = smul.addr %s20, 128
      %s22 = scalar_lea.hbm %s0, %s21
      %s23 = sshll.u32 [#allocation3], 4
      %s24 = int_to_ptr.vmem [resolvable:$true] %s23
      %29 = dma.hbm_to_vmem [thread:$0]  %s22, 512, %s24, [#allocation4], 256, 256, 16
    $region5: #{tpu_custom_call.1} parent=1 // pred_fallthru
      _
    // Predicated region
    $region6: #{tpu_custom_call.1} parent=1 // pred_check
      _
    $region7: #{tpu_custom_call.1} parent=1 // pred_check_branch
      %31 = sbr.rel (0) target = $region9
    $region8: #{tpu_custom_call.1} parent=1 // pred_region
      %s32 = sadd.s32 0, 0
      %s33 = smul.u32 2, %s32
      %s35 = ssub.s32 512, 512
      %36 = vsyncadd [#allocation7], %s35
      %s37 = smul.addr %s33, 2
      %s38 = smul.addr %s37, 128
      %s39 = scalar_lea.hbm %s1, %s38
      %s40 = sshll.u32 [#allocation6], 4
      %s41 = int_to_ptr.vmem [resolvable:$true] %s40
      %46 = dma.hbm_to_vmem [thread:$0]  %s39, 512, %s41, [#allocation7], 256, 256, 16
    $region9: #{tpu_custom_call.1} parent=1 // pred_fallthru
      _
    // Predicated region
    $region10: #{tpu_custom_call.1} parent=1 // pred_check
      _
    $region11: #{tpu_custom_call.1} parent=1 // pred_check_branch
      %48 = sbr.rel (0) target = $region13
    $region12: #{tpu_custom_call.1} parent=1 // pred_region
      %s49 = sadd.s32 0, 0
      %s50 = smul.u32 2, %s49
      %s52 = ssub.s32 512, 512
      %53 = vsyncadd [#allocation7], %s52
      %s54 = smul.addr %s50, 2
      %s55 = smul.addr %s54, 128
      %s56 = scalar_lea.hbm %s2, %s55
      %s57 = sshll.u32 [#allocation8], 4
      %s58 = int_to_ptr.vmem [resolvable:$true] %s57
      %63 = dma.hbm_to_vmem [thread:$0]  %s56, 512, %s58, [#allocation7], 256, 256, 16
    $region13: #{tpu_custom_call.1} parent=1 // pred_fallthru
      _
    // Predicated region
    $region14: #{tpu_custom_call.1} parent=1 // pred_check
      _
    $region15: #{tpu_custom_call.1} parent=1 // pred_check_branch
      %65 = sbr.rel (0) target = $region17
    $region16: #{tpu_custom_call.1} parent=1 // pred_region
      %s66 = sadd.s32 0, 0
      %s67 = smul.u32 2, %s66
      %s69 = ssub.s32 512, 512
      %70 = vsyncadd [#allocation10], %s69
      %s71 = smul.addr %s67, 2
      %s72 = smul.addr %s71, 128
      %s73 = scalar_lea.hbm %s3, %s72
      %s74 = sshll.u32 [#allocation9], 4
      %s75 = int_to_ptr.vmem [resolvable:$true] %s74
      %80 = dma.hbm_to_vmem [thread:$0]  %s73, 512, %s75, [#allocation10], 256, 256, 16
    $region17: #{tpu_custom_call.1} parent=1 // pred_fallthru
      _
    // Predicated region
    $region18: #{tpu_custom_call.1} parent=1 // pred_check
      _
    $region19: #{tpu_custom_call.1} parent=1 // pred_check_branch
      %82 = sbr.rel (0) target = $region21
    $region20: #{tpu_custom_call.1} parent=1 // pred_region
      %83 = dma.done [#allocation4], 512
    $region21: #{tpu_custom_call.1} parent=1 // pred_fallthru
      _
    // Predicated region
    $region22: #{tpu_custom_call.1} parent=1 // pred_check
      _
    $region23: #{tpu_custom_call.1} parent=1 // pred_check_branch
      %85 = sbr.rel (0) target = $region25
    $region24: #{tpu_custom_call.1} parent=1 // pred_region
      %86 = dma.done [#allocation7], 512
    $region25: #{tpu_custom_call.1} parent=1 // pred_fallthru
      _
    // Predicated region
    $region26: #{tpu_custom_call.1} parent=1 // pred_check
      _
    $region27: #{tpu_custom_call.1} parent=1 // pred_check_branch
      %88 = sbr.rel (0) target = $region29
    $region28: #{tpu_custom_call.1} parent=1 // pred_region
      %89 = dma.done [#allocation7], 512
    $region29: #{tpu_custom_call.1} parent=1 // pred_fallthru
      _
    // Predicated region
    $region30: #{tpu_custom_call.1} parent=1 // pred_check
      _
    $region31: #{tpu_custom_call.1} parent=1 // pred_check_branch
      %91 = sbr.rel (0) target = $region33
    $region32: #{tpu_custom_call.1} parent=1 // pred_region
      %92 = dma.done [#allocation10], 512
    $region33: #{tpu_custom_call.1} parent=1 // pred_fallthru
      _
    %s93 = sadd.s32 0, 0
    %s94 = smul.u32 2, %s93
    %s95 = sadd.s32 0, 0
    %s96 = smul.u32 2, %s95
    %s97 = sadd.s32 0, 0
    %s98 = smul.u32 2, %s97
    %s99 = sadd.s32 0, 0
    %s100 = smul.u32 2, %s99
    %p101 = scmp.eq.s32.totalorder 0, 0
    // Predicated region
    $region34: #{tpu_custom_call.1} parent=1 // pred_check
      %p102 = pneg %p101
    $region35: #{tpu_custom_call.1} parent=1 // pred_check_branch
      %104 = sbr.rel (%p102) target = $region37
    $region36: #{tpu_custom_call.1} parent=1 // pred_region
      %105 = vst [vmem:[#allocation2] sm:$0xff] 0.0
      %106 = vst [vmem:[#allocation2 + $0x8] sm:$0xff] 0.0
      %107 = vst [vmem:[#allocation2 + $0x10] sm:$0xff] 0.0
      %108 = vst [vmem:[#allocation2 + $0x18] sm:$0xff] 0.0
    $region37: #{tpu_custom_call.1} parent=1 // pred_fallthru
      _
    %v109 = vld [vmem:[#allocation3] sm:$0xff]
    %v110 = vld [vmem:[#allocation3 + $0x8] sm:$0xff]
    %v111 = vld [vmem:[#allocation3 + $0x10] sm:$0xff]
    %v112 = vld [vmem:[#allocation3 + $0x18] sm:$0xff]
    %v113 = vld [vmem:[#allocation6] sm:$0xff]
    %v114 = vld [vmem:[#allocation6 + $0x8] sm:$0xff]
    %v115 = vld [vmem:[#allocation6 + $0x10] sm:$0xff]
    %v116 = vld [vmem:[#allocation6 + $0x18] sm:$0xff]
    %v117 = vld [vmem:[#allocation8] sm:$0xff]
    %v118 = vld [vmem:[#allocation8 + $0x8] sm:$0xff]
    %v119 = vld [vmem:[#allocation8 + $0x10] sm:$0xff]
    %v120 = vld [vmem:[#allocation8 + $0x18] sm:$0xff]
    %v121 = vld [vmem:[#allocation9] sm:$0xff]
    %v122 = vld [vmem:[#allocation9 + $0x8] sm:$0xff]
    %v123 = vld [vmem:[#allocation9 + $0x10] sm:$0xff]
    %v124 = vld [vmem:[#allocation9 + $0x18] sm:$0xff]
    %v125 = vadd.f32 %v113, 1e-10
    %v126 = vadd.f32 %v114, 1e-10
    %v127 = vadd.f32 %v115, 1e-10
    %v128 = vadd.f32 %v116, 1e-10
    %v129 = vlog2.pop %v125
    %v130 = vmul.f32 %v129, 0.6931472
    %v131 = vlog2.pop %v126
    %v132 = vmul.f32 %v131, 0.6931472
    %v133 = vlog2.pop %v127
    %v134 = vmul.f32 %v133, 0.6931472
    %v135 = vlog2.pop %v128
    %v136 = vmul.f32 %v135, 0.6931472
    %v137 = vadd.f32 %v109, 1e-10
    %v138 = vadd.f32 %v110, 1e-10
    %v139 = vadd.f32 %v111, 1e-10
    %v140 = vadd.f32 %v112, 1e-10
    %v141 = vlog2.pop %v137
    %v142 = vmul.f32 %v141, 0.6931472
    %v143 = vlog2.pop %v138
    %v144 = vmul.f32 %v143, 0.6931472
    %v145 = vlog2.pop %v139
    %v146 = vmul.f32 %v145, 0.6931472
    %v147 = vlog2.pop %v140
    %v148 = vmul.f32 %v147, 0.6931472
    %v149 = vadd.f32 %v113, %v109
    %v150 = vadd.f32 %v114, %v110
    %v151 = vadd.f32 %v115, %v111
    %v152 = vadd.f32 %v116, %v112
    %v153 = vadd.f32 %v149, 1e-10
    %v154 = vadd.f32 %v150, 1e-10
    %v155 = vadd.f32 %v151, 1e-10
    %v156 = vadd.f32 %v152, 1e-10
    %v157 = vlog2.pop %v153
    %v158 = vmul.f32 %v157, 0.6931472
    %v159 = vlog2.pop %v154
    %v160 = vmul.f32 %v159, 0.6931472
    %v161 = vlog2.pop %v155
    %v162 = vmul.f32 %v161, 0.6931472
    %v163 = vlog2.pop %v156
    %v164 = vmul.f32 %v163, 0.6931472
    %v165 = vadd.f32 %v113, %v121
    %v166 = vadd.f32 %v114, %v122
    %v167 = vadd.f32 %v115, %v123
    %v168 = vadd.f32 %v116, %v124
    %v169 = vsub.f32 %v158, %v130
    %v170 = vsub.f32 %v160, %v132
    %v171 = vsub.f32 %v162, %v134
    %v172 = vsub.f32 %v164, %v136
    %v173 = vmul.f32 %v165, %v169
    %v174 = vmul.f32 %v166, %v170
    %v175 = vmul.f32 %v167, %v171
    %v176 = vmul.f32 %v168, %v172
    %v177 = vsub.f32 %v130, %v142
    %v178 = vsub.f32 %v132, %v144
    %v179 = vsub.f32 %v134, %v146
    %v180 = vsub.f32 %v136, %v148
    %v181 = vmul.f32 %v121, %v177
    %v182 = vmul.f32 %v122, %v178
    %v183 = vmul.f32 %v123, %v179
    %v184 = vmul.f32 %v124, %v180
    %v185 = vadd.f32 %v173, %v181
    %v186 = vadd.f32 %v174, %v182
    %v187 = vadd.f32 %v175, %v183
    %v188 = vadd.f32 %v176, %v184
    %v189 = vadd.f32 %v121, 1.0
    %v190 = vadd.f32 %v122, 1.0
    %v191 = vadd.f32 %v123, 1.0
    %v192 = vadd.f32 %v124, 1.0
    %v193 = vadd.f32 %v165, 1e-10
    %v194 = vadd.f32 %v166, 1e-10
    %v195 = vadd.f32 %v167, 1e-10
    %v196 = vadd.f32 %v168, 1e-10
    %v197 = vmin.f32 %v125, 40000.0
    %v198 = vmin.f32 %v126, 40000.0
    %v199 = vmin.f32 %v127, 40000.0
    %v200 = vmin.f32 %v128, 40000.0
    %v201 = vsub.f32 %v197, 1.0
    %v202 = vsub.f32 %v198, 1.0
    %v203 = vsub.f32 %v199, 1.0
    %v204 = vsub.f32 %v200, 1.0
    %v205 = vadd.f32 %v197, 1.0
    %v206 = vadd.f32 %v198, 1.0
    %v207 = vadd.f32 %v199, 1.0
    %v208 = vadd.f32 %v200, 1.0
    %v209 = vmul.f32 %v197, %v205
    %v210 = vmul.f32 %v198, %v206
    %v211 = vmul.f32 %v199, %v207
    %v212 = vmul.f32 %v200, %v208
    %v213 = vadd.f32 %v197, 2.0
    %v214 = vadd.f32 %v198, 2.0
    %v215 = vadd.f32 %v199, 2.0
    %v216 = vadd.f32 %v200, 2.0
    %v217 = vmul.f32 %v209, %v213
    %v218 = vmul.f32 %v210, %v214
    %v219 = vmul.f32 %v211, %v215
    %v220 = vmul.f32 %v212, %v216
    %v221 = vadd.f32 %v197, 3.0
    %v222 = vadd.f32 %v198, 3.0
    %v223 = vadd.f32 %v199, 3.0
    %v224 = vadd.f32 %v200, 3.0
    %v225 = vmul.f32 %v217, %v221
    %v226 = vmul.f32 %v218, %v222
    %v227 = vmul.f32 %v219, %v223
    %v228 = vmul.f32 %v220, %v224
    %v229 = vadd.f32 %v197, 4.0
    %v230 = vadd.f32 %v198, 4.0
    %v231 = vadd.f32 %v199, 4.0
    %v232 = vadd.f32 %v200, 4.0
    %v233 = vmul.f32 %v225, %v229
    %v234 = vmul.f32 %v226, %v230
    %v235 = vmul.f32 %v227, %v231
    %v236 = vmul.f32 %v228, %v232
    %v237 = vadd.f32 %v197, 5.0
    %v238 = vadd.f32 %v198, 5.0
    %v239 = vadd.f32 %v199, 5.0
    %v240 = vadd.f32 %v200, 5.0
    %v241 = vmul.f32 %v233, %v237
    %v242 = vmul.f32 %v234, %v238
    %v243 = vmul.f32 %v235, %v239
    %v244 = vmul.f32 %v236, %v240
    %v245 = vadd.f32 %v197, 6.0
    %v246 = vadd.f32 %v198, 6.0
    %v247 = vadd.f32 %v199, 6.0
    %v248 = vadd.f32 %v200, 6.0
    %v249 = vmul.f32 %v241, %v245
    %v250 = vmul.f32 %v242, %v246
    %v251 = vmul.f32 %v243, %v247
    %v252 = vmul.f32 %v244, %v248
    %v253 = vadd.f32 %v197, 7.0
    %v254 = vadd.f32 %v198, 7.0
    %v255 = vadd.f32 %v199, 7.0
    %v256 = vadd.f32 %v200, 7.0
    %v257 = vmul.f32 %v249, %v253
    %v258 = vmul.f32 %v250, %v254
    %v259 = vmul.f32 %v251, %v255
    %v260 = vmul.f32 %v252, %v256
    %v261 = vadd.f32 %v201, 60.458332
    %v262 = vadd.f32 %v202, 60.458332
    %v263 = vadd.f32 %v203, 60.458332
    %v264 = vadd.f32 %v204, 60.458332
    %v265 = vmul.f32 %v261, %v201
    %v266 = vmul.f32 %v262, %v202
    %v267 = vmul.f32 %v263, %v203
    %v268 = vmul.f32 %v264, %v204
    %v269 = vadd.f32 %v265, 1599.0425
    %v270 = vadd.f32 %v266, 1599.0425
    %v271 = vadd.f32 %v267, 1599.0425
    %v272 = vadd.f32 %v268, 1599.0425
    %v273 = vmul.f32 %v269, %v201
    %v274 = vmul.f32 %v270, %v202
    %v275 = vmul.f32 %v271, %v203
    %v276 = vmul.f32 %v272, %v204
    %v277 = vadd.f32 %v273, 24165.51
    %v278 = vadd.f32 %v274, 24165.51
    %v279 = vadd.f32 %v275, 24165.51
    %v280 = vadd.f32 %v276, 24165.51
    %v281 = vmul.f32 %v277, %v201
    %v282 = vmul.f32 %v278, %v202
    %v283 = vmul.f32 %v279, %v203
    %v284 = vmul.f32 %v280, %v204
    %v285 = vadd.f32 %v281, 228235.22
    %v286 = vadd.f32 %v282, 228235.22
    %v287 = vadd.f32 %v283, 228235.22
    %v288 = vadd.f32 %v284, 228235.22
    %v289 = vmul.f32 %v285, %v201
    %v290 = vmul.f32 %v286, %v202
    %v291 = vmul.f32 %v287, %v203
    %v292 = vmul.f32 %v288, %v204
    %v293 = vadd.f32 %v289, 1379496.3
    %v294 = vadd.f32 %v290, 1379496.3
    %v295 = vadd.f32 %v291, 1379496.3
    %v296 = vadd.f32 %v292, 1379496.3
    %v297 = vmul.f32 %v293, %v201
    %v298 = vmul.f32 %v294, %v202
    %v299 = vmul.f32 %v295, %v203
    %v300 = vmul.f32 %v296, %v204
    %v301 = vadd.f32 %v297, 5210869.0
    %v302 = vadd.f32 %v298, 5210869.0
    %v303 = vadd.f32 %v299, 5210869.0
    %v304 = vadd.f32 %v300, 5210869.0
    %v305 = vmul.f32 %v301, %v201
    %v306 = vmul.f32 %v302, %v202
    %v307 = vmul.f32 %v303, %v203
    %v308 = vmul.f32 %v304, %v204
    %v309 = vadd.f32 %v305, 11246929.0
    %v310 = vadd.f32 %v306, 11246929.0
    %v311 = vadd.f32 %v307, 11246929.0
    %v312 = vadd.f32 %v308, 11246929.0
    %v313 = vmul.f32 %v309, %v201
    %v314 = vmul.f32 %v310, %v202
    %v315 = vmul.f32 %v311, %v203
    %v316 = vmul.f32 %v312, %v204
    %v317 = vadd.f32 %v313, 10619610.0
    %v318 = vadd.f32 %v314, 10619610.0
    %v319 = vadd.f32 %v315, 10619610.0
    %v320 = vadd.f32 %v316, 10619610.0
    %v321 = vrcp.pop %v257
    %v322 = vrcp.pop %v258
    %v323 = vrcp.pop %v259
    %v324 = vrcp.pop %v260
    %v325 = vmul.f32 %v317, %v321
    %v326 = vmul.f32 %v318, %v322
    %v327 = vmul.f32 %v319, %v323
    %v328 = vmul.f32 %v320, %v324
    %v329 = vmin.f32 %v189, 40000.0
    %v330 = vmin.f32 %v190, 40000.0
    %v331 = vmin.f32 %v191, 40000.0
    %v332 = vmin.f32 %v192, 40000.0
    %v333 = vsub.f32 %v329, 1.0
    %v334 = vsub.f32 %v330, 1.0
    %v335 = vsub.f32 %v331, 1.0
    %v336 = vsub.f32 %v332, 1.0
    %v337 = vadd.f32 %v329, 1.0
    %v338 = vadd.f32 %v330, 1.0
    %v339 = vadd.f32 %v331, 1.0
    %v340 = vadd.f32 %v332, 1.0
    %v341 = vmul.f32 %v329, %v337
    %v342 = vmul.f32 %v330, %v338
    %v343 = vmul.f32 %v331, %v339
    %v344 = vmul.f32 %v332, %v340
    %v345 = vadd.f32 %v329, 2.0
    %v346 = vadd.f32 %v330, 2.0
    %v347 = vadd.f32 %v331, 2.0
    %v348 = vadd.f32 %v332, 2.0
    %v349 = vmul.f32 %v341, %v345
    %v350 = vmul.f32 %v342, %v346
    %v351 = vmul.f32 %v343, %v347
    %v352 = vmul.f32 %v344, %v348
    %v353 = vadd.f32 %v329, 3.0
    %v354 = vadd.f32 %v330, 3.0
    %v355 = vadd.f32 %v331, 3.0
    %v356 = vadd.f32 %v332, 3.0
    %v357 = vmul.f32 %v349, %v353
    %v358 = vmul.f32 %v350, %v354
    %v359 = vmul.f32 %v351, %v355
    %v360 = vmul.f32 %v352, %v356
    %v361 = vadd.f32 %v329, 4.0
    %v362 = vadd.f32 %v330, 4.0
    %v363 = vadd.f32 %v331, 4.0
    %v364 = vadd.f32 %v332, 4.0
    %v365 = vmul.f32 %v357, %v361
    %v366 = vmul.f32 %v358, %v362
    %v367 = vmul.f32 %v359, %v363
    %v368 = vmul.f32 %v360, %v364
    %v369 = vadd.f32 %v329, 5.0
    %v370 = vadd.f32 %v330, 5.0
    %v371 = vadd.f32 %v331, 5.0
    %v372 = vadd.f32 %v332, 5.0
    %v373 = vmul.f32 %v365, %v369
    %v374 = vmul.f32 %v366, %v370
    %v375 = vmul.f32 %v367, %v371
    %v376 = vmul.f32 %v368, %v372
    %v377 = vadd.f32 %v329, 6.0
    %v378 = vadd.f32 %v330, 6.0
    %v379 = vadd.f32 %v331, 6.0
    %v380 = vadd.f32 %v332, 6.0
    %v381 = vmul.f32 %v373, %v377
    %v382 = vmul.f32 %v374, %v378
    %v383 = vmul.f32 %v375, %v379
    %v384 = vmul.f32 %v376, %v380
    %v385 = vadd.f32 %v329, 7.0
    %v386 = vadd.f32 %v330, 7.0
    %v387 = vadd.f32 %v331, 7.0
    %v388 = vadd.f32 %v332, 7.0
    %v389 = vmul.f32 %v381, %v385
    %v390 = vmul.f32 %v382, %v386
    %v391 = vmul.f32 %v383, %v387
    %v392 = vmul.f32 %v384, %v388
    %v393 = vadd.f32 %v333, 60.458332
    %v394 = vadd.f32 %v334, 60.458332
    %v395 = vadd.f32 %v335, 60.458332
    %v396 = vadd.f32 %v336, 60.458332
    %v397 = vmul.f32 %v393, %v333
    %v398 = vmul.f32 %v394, %v334
    %v399 = vmul.f32 %v395, %v335
    %v400 = vmul.f32 %v396, %v336
    %v401 = vadd.f32 %v397, 1599.0425
    %v402 = vadd.f32 %v398, 1599.0425
    %v403 = vadd.f32 %v399, 1599.0425
    %v404 = vadd.f32 %v400, 1599.0425
    %v405 = vmul.f32 %v401, %v333
    %v406 = vmul.f32 %v402, %v334
    %v407 = vmul.f32 %v403, %v335
    %v408 = vmul.f32 %v404, %v336
    %v409 = vadd.f32 %v405, 24165.51
    %v410 = vadd.f32 %v406, 24165.51
    %v411 = vadd.f32 %v407, 24165.51
    %v412 = vadd.f32 %v408, 24165.51
    %v413 = vmul.f32 %v409, %v333
    %v414 = vmul.f32 %v410, %v334
    %v415 = vmul.f32 %v411, %v335
    %v416 = vmul.f32 %v412, %v336
    %v417 = vadd.f32 %v413, 228235.22
    %v418 = vadd.f32 %v414, 228235.22
    %v419 = vadd.f32 %v415, 228235.22
    %v420 = vadd.f32 %v416, 228235.22
    %v421 = vmul.f32 %v417, %v333
    %v422 = vmul.f32 %v418, %v334
    %v423 = vmul.f32 %v419, %v335
    %v424 = vmul.f32 %v420, %v336
    %v425 = vadd.f32 %v421, 1379496.3
    %v426 = vadd.f32 %v422, 1379496.3
    %v427 = vadd.f32 %v423, 1379496.3
    %v428 = vadd.f32 %v424, 1379496.3
    %v429 = vmul.f32 %v425, %v333
    %v430 = vmul.f32 %v426, %v334
    %v431 = vmul.f32 %v427, %v335
    %v432 = vmul.f32 %v428, %v336
    %v433 = vadd.f32 %v429, 5210869.0
    %v434 = vadd.f32 %v430, 5210869.0
    %v435 = vadd.f32 %v431, 5210869.0
    %v436 = vadd.f32 %v432, 5210869.0
    %v437 = vmul.f32 %v433, %v333
    %v438 = vmul.f32 %v434, %v334
    %v439 = vmul.f32 %v435, %v335
    %v440 = vmul.f32 %v436, %v336
    %v441 = vadd.f32 %v437, 11246929.0
    %v442 = vadd.f32 %v438, 11246929.0
    %v443 = vadd.f32 %v439, 11246929.0
    %v444 = vadd.f32 %v440, 11246929.0
    %v445 = vmul.f32 %v441, %v333
    %v446 = vmul.f32 %v442, %v334
    %v447 = vmul.f32 %v443, %v335
    %v448 = vmul.f32 %v444, %v336
    %v449 = vadd.f32 %v445, 10619610.0
    %v450 = vadd.f32 %v446, 10619610.0
    %v451 = vadd.f32 %v447, 10619610.0
    %v452 = vadd.f32 %v448, 10619610.0
    %v453 = vrcp.pop %v389
    %v454 = vrcp.pop %v390
    %v455 = vrcp.pop %v391
    %v456 = vrcp.pop %v392
    %v457 = vmul.f32 %v449, %v453
    %v458 = vmul.f32 %v450, %v454
    %v459 = vmul.f32 %v451, %v455
    %v460 = vmul.f32 %v452, %v456
    %v461 = vmin.f32 %v193, 40000.0
    %v462 = vmin.f32 %v194, 40000.0
    %v463 = vmin.f32 %v195, 40000.0
    %v464 = vmin.f32 %v196, 40000.0
    %v465 = vsub.f32 %v461, 1.0
    %v466 = vsub.f32 %v462, 1.0
    %v467 = vsub.f32 %v463, 1.0
    %v468 = vsub.f32 %v464, 1.0
    %v469 = vadd.f32 %v461, 1.0
    %v470 = vadd.f32 %v462, 1.0
    %v471 = vadd.f32 %v463, 1.0
    %v472 = vadd.f32 %v464, 1.0
    %v473 = vmul.f32 %v461, %v469
    %v474 = vmul.f32 %v462, %v470
    %v475 = vmul.f32 %v463, %v471
    %v476 = vmul.f32 %v464, %v472
    %v477 = vadd.f32 %v461, 2.0
    %v478 = vadd.f32 %v462, 2.0
    %v479 = vadd.f32 %v463, 2.0
    %v480 = vadd.f32 %v464, 2.0
    %v481 = vmul.f32 %v473, %v477
    %v482 = vmul.f32 %v474, %v478
    %v483 = vmul.f32 %v475, %v479
    %v484 = vmul.f32 %v476, %v480
    %v485 = vadd.f32 %v461, 3.0
    %v486 = vadd.f32 %v462, 3.0
    %v487 = vadd.f32 %v463, 3.0
    %v488 = vadd.f32 %v464, 3.0
    %v489 = vmul.f32 %v481, %v485
    %v490 = vmul.f32 %v482, %v486
    %v491 = vmul.f32 %v483, %v487
    %v492 = vmul.f32 %v484, %v488
    %v493 = vadd.f32 %v461, 4.0
    %v494 = vadd.f32 %v462, 4.0
    %v495 = vadd.f32 %v463, 4.0
    %v496 = vadd.f32 %v464, 4.0
    %v497 = vmul.f32 %v489, %v493
    %v498 = vmul.f32 %v490, %v494
    %v499 = vmul.f32 %v491, %v495
    %v500 = vmul.f32 %v492, %v496
    %v501 = vadd.f32 %v461, 5.0
    %v502 = vadd.f32 %v462, 5.0
    %v503 = vadd.f32 %v463, 5.0
    %v504 = vadd.f32 %v464, 5.0
    %v505 = vmul.f32 %v497, %v501
    %v506 = vmul.f32 %v498, %v502
    %v507 = vmul.f32 %v499, %v503
    %v508 = vmul.f32 %v500, %v504
    %v509 = vadd.f32 %v461, 6.0
    %v510 = vadd.f32 %v462, 6.0
    %v511 = vadd.f32 %v463, 6.0
    %v512 = vadd.f32 %v464, 6.0
    %v513 = vmul.f32 %v505, %v509
    %v514 = vmul.f32 %v506, %v510
    %v515 = vmul.f32 %v507, %v511
    %v516 = vmul.f32 %v508, %v512
    %v517 = vadd.f32 %v461, 7.0
    %v518 = vadd.f32 %v462, 7.0
    %v519 = vadd.f32 %v463, 7.0
    %v520 = vadd.f32 %v464, 7.0
    %v521 = vmul.f32 %v513, %v517
    %v522 = vmul.f32 %v514, %v518
    %v523 = vmul.f32 %v515, %v519
    %v524 = vmul.f32 %v516, %v520
    %v525 = vadd.f32 %v465, 60.458332
    %v526 = vadd.f32 %v466, 60.458332
    %v527 = vadd.f32 %v467, 60.458332
    %v528 = vadd.f32 %v468, 60.458332
    %v529 = vmul.f32 %v525, %v465
    %v530 = vmul.f32 %v526, %v466
    %v531 = vmul.f32 %v527, %v467
    %v532 = vmul.f32 %v528, %v468
    %v533 = vadd.f32 %v529, 1599.0425
    %v534 = vadd.f32 %v530, 1599.0425
    %v535 = vadd.f32 %v531, 1599.0425
    %v536 = vadd.f32 %v532, 1599.0425
    %v537 = vmul.f32 %v533, %v465
    %v538 = vmul.f32 %v534, %v466
    %v539 = vmul.f32 %v535, %v467
    %v540 = vmul.f32 %v536, %v468
    %v541 = vadd.f32 %v537, 24165.51
    %v542 = vadd.f32 %v538, 24165.51
    %v543 = vadd.f32 %v539, 24165.51
    %v544 = vadd.f32 %v540, 24165.51
    %v545 = vmul.f32 %v541, %v465
    %v546 = vmul.f32 %v542, %v466
    %v547 = vmul.f32 %v543, %v467
    %v548 = vmul.f32 %v544, %v468
    %v549 = vadd.f32 %v545, 228235.22
    %v550 = vadd.f32 %v546, 228235.22
    %v551 = vadd.f32 %v547, 228235.22
    %v552 = vadd.f32 %v548, 228235.22
    %v553 = vmul.f32 %v549, %v465
    %v554 = vmul.f32 %v550, %v466
    %v555 = vmul.f32 %v551, %v467
    %v556 = vmul.f32 %v552, %v468
    %v557 = vadd.f32 %v553, 1379496.3
    %v558 = vadd.f32 %v554, 1379496.3
    %v559 = vadd.f32 %v555, 1379496.3
    %v560 = vadd.f32 %v556, 1379496.3
    %v561 = vmul.f32 %v557, %v465
    %v562 = vmul.f32 %v558, %v466
    %v563 = vmul.f32 %v559, %v467
    %v564 = vmul.f32 %v560, %v468
    %v565 = vadd.f32 %v561, 5210869.0
    %v566 = vadd.f32 %v562, 5210869.0
    %v567 = vadd.f32 %v563, 5210869.0
    %v568 = vadd.f32 %v564, 5210869.0
    %v569 = vmul.f32 %v565, %v465
    %v570 = vmul.f32 %v566, %v466
    %v571 = vmul.f32 %v567, %v467
    %v572 = vmul.f32 %v568, %v468
    %v573 = vadd.f32 %v569, 11246929.0
    %v574 = vadd.f32 %v570, 11246929.0
    %v575 = vadd.f32 %v571, 11246929.0
    %v576 = vadd.f32 %v572, 11246929.0
    %v577 = vmul.f32 %v573, %v465
    %v578 = vmul.f32 %v574, %v466
    %v579 = vmul.f32 %v575, %v467
    %v580 = vmul.f32 %v576, %v468
    %v581 = vadd.f32 %v577, 10619610.0
    %v582 = vadd.f32 %v578, 10619610.0
    %v583 = vadd.f32 %v579, 10619610.0
    %v584 = vadd.f32 %v580, 10619610.0
    %v585 = vrcp.pop %v521
    %v586 = vrcp.pop %v522
    %v587 = vrcp.pop %v523
    %v588 = vrcp.pop %v524
    %v589 = vmul.f32 %v581, %v585
    %v590 = vmul.f32 %v582, %v586
    %v591 = vmul.f32 %v583, %v587
    %v592 = vmul.f32 %v584, %v588
    %v593 = vsub.f32 %v125, 0.5
    %v594 = vsub.f32 %v126, 0.5
    %v595 = vsub.f32 %v127, 0.5
    %v596 = vsub.f32 %v128, 0.5
    %v597 = vadd.f32 %v125, 6.5
    %v598 = vadd.f32 %v126, 6.5
    %v599 = vadd.f32 %v127, 6.5
    %v600 = vadd.f32 %v128, 6.5
    %v601 = vlog2.pop %v597
    %v602 = vmul.f32 %v601, 0.6931472
    %v603 = vlog2.pop %v598
    %v604 = vmul.f32 %v603, 0.6931472
    %v605 = vlog2.pop %v599
    %v606 = vmul.f32 %v605, 0.6931472
    %v607 = vlog2.pop %v600
    %v608 = vmul.f32 %v607, 0.6931472
    %v609 = vmul.f32 %v593, %v602
    %v610 = vmul.f32 %v594, %v604
    %v611 = vmul.f32 %v595, %v606
    %v612 = vmul.f32 %v596, %v608
    %v613 = vadd.f32 %v609, -6.5810614
    %v614 = vadd.f32 %v610, -6.5810614
    %v615 = vadd.f32 %v611, -6.5810614
    %v616 = vadd.f32 %v612, -6.5810614
    %v617 = vsub.f32 %v189, 0.5
    %v618 = vsub.f32 %v190, 0.5
    %v619 = vsub.f32 %v191, 0.5
    %v620 = vsub.f32 %v192, 0.5
    %v621 = vadd.f32 %v189, 6.5
    %v622 = vadd.f32 %v190, 6.5
    %v623 = vadd.f32 %v191, 6.5
    %v624 = vadd.f32 %v192, 6.5
    %v625 = vlog2.pop %v621
    %v626 = vmul.f32 %v625, 0.6931472
    %v627 = vlog2.pop %v622
    %v628 = vmul.f32 %v627, 0.6931472
    %v629 = vlog2.pop %v623
    %v630 = vmul.f32 %v629, 0.6931472
    %v631 = vlog2.pop %v624
    %v632 = vmul.f32 %v631, 0.6931472
    %v633 = vmul.f32 %v617, %v626
    %v634 = vmul.f32 %v618, %v628
    %v635 = vmul.f32 %v619, %v630
    %v636 = vmul.f32 %v620, %v632
    %v637 = vadd.f32 %v613, %v633
    %v638 = vadd.f32 %v614, %v634
    %v639 = vadd.f32 %v615, %v635
    %v640 = vadd.f32 %v616, %v636
    %v641 = vsub.f32 %v193, 0.5
    %v642 = vsub.f32 %v194, 0.5
    %v643 = vsub.f32 %v195, 0.5
    %v644 = vsub.f32 %v196, 0.5
    %v645 = vadd.f32 %v193, 6.5
    %v646 = vadd.f32 %v194, 6.5
    %v647 = vadd.f32 %v195, 6.5
    %v648 = vadd.f32 %v196, 6.5
    %v649 = vlog2.pop %v645
    %v650 = vmul.f32 %v649, 0.6931472
    %v651 = vlog2.pop %v646
    %v652 = vmul.f32 %v651, 0.6931472
    %v653 = vlog2.pop %v647
    %v654 = vmul.f32 %v653, 0.6931472
    %v655 = vlog2.pop %v648
    %v656 = vmul.f32 %v655, 0.6931472
    %v657 = vmul.f32 %v641, %v650
    %v658 = vmul.f32 %v642, %v652
    %v659 = vmul.f32 %v643, %v654
    %v660 = vmul.f32 %v644, %v656
    %v661 = vsub.f32 %v637, %v657
    %v662 = vsub.f32 %v638, %v658
    %v663 = vsub.f32 %v639, %v659
    %v664 = vsub.f32 %v640, %v660
    %v665 = vmul.f32 %v325, %v457
    %v666 = vmul.f32 %v326, %v458
    %v667 = vmul.f32 %v327, %v459
    %v668 = vmul.f32 %v328, %v460
    %v669 = vrcp.pop %v589
    %v670 = vrcp.pop %v590
    %v671 = vrcp.pop %v591
    %v672 = vrcp.pop %v592
    %v673 = vmul.f32 %v665, %v669
    %v674 = vmul.f32 %v666, %v670
    %v675 = vmul.f32 %v667, %v671
    %v676 = vmul.f32 %v668, %v672
    %v677 = vlog2.pop %v673
    %v678 = vmul.f32 %v677, 0.6931472
    %v679 = vlog2.pop %v674
    %v680 = vmul.f32 %v679, 0.6931472
    %v681 = vlog2.pop %v675
    %v682 = vmul.f32 %v681, 0.6931472
    %v683 = vlog2.pop %v676
    %v684 = vmul.f32 %v683, 0.6931472
    %v685 = vadd.f32 %v661, %v678
    %v686 = vadd.f32 %v662, %v680
    %v687 = vadd.f32 %v663, %v682
    %v688 = vadd.f32 %v664, %v684
    %v689 = vadd.f32 %v685, %v185
    %v690 = vadd.f32 %v686, %v186
    %v691 = vadd.f32 %v687, %v187
    %v692 = vadd.f32 %v688, %v188
    %v693 = vsub.f32 1.0, %v117
    %v694 = vsub.f32 1.0, %v118
    %v695 = vsub.f32 1.0, %v119
    %v696 = vsub.f32 1.0, %v120
    %v697 = vadd.f32 %v693, 1e-10
    %v698 = vadd.f32 %v694, 1e-10
    %v699 = vadd.f32 %v695, 1e-10
    %v700 = vadd.f32 %v696, 1e-10
    %v701 = vlog2.pop %v697
    %v702 = vmul.f32 %v701, 0.6931472
    %v703 = vlog2.pop %v698
    %v704 = vmul.f32 %v703, 0.6931472
    %v705 = vlog2.pop %v699
    %v706 = vmul.f32 %v705, 0.6931472
    %v707 = vlog2.pop %v700
    %v708 = vmul.f32 %v707, 0.6931472
    %v709 = vsub.f32 %v689, %v702
    %v710 = vsub.f32 %v690, %v704
    %v711 = vsub.f32 %v691, %v706
    %v712 = vsub.f32 %v692, %v708
    %v713 = vld [vmem:[#allocation2] sm:$0xff]
    %v714 = vld [vmem:[#allocation2 + $0x8] sm:$0xff]
    %v715 = vld [vmem:[#allocation2 + $0x10] sm:$0xff]
    %v716 = vld [vmem:[#allocation2 + $0x18] sm:$0xff]
    %v717 = vadd.f32 %v713, %v709
    %v718 = vadd.f32 %v714, %v710
    %v719 = vadd.f32 %v715, %v711
    %v720 = vadd.f32 %v716, %v712
    %721 = vst [vmem:[#allocation2] sm:$0xff] %v717
    %722 = vst [vmem:[#allocation2 + $0x8] sm:$0xff] %v718
    %723 = vst [vmem:[#allocation2 + $0x10] sm:$0xff] %v719
    %724 = vst [vmem:[#allocation2 + $0x18] sm:$0xff] %v720
    // Predicated region
    $region38: #{tpu_custom_call.1} parent=1 // pred_check
      %p725 = pneg %p101
    $region39: #{tpu_custom_call.1} parent=1 // pred_check_branch
      %727 = sbr.rel (%p725) target = $region41
    $region40: #{tpu_custom_call.1} parent=1 // pred_region
      %v728 = vld [vmem:[#allocation2] sm:$0xff]
      %v729 = vld [vmem:[#allocation2 + $0x8] sm:$0xff]
      %v730 = vld [vmem:[#allocation2 + $0x10] sm:$0xff]
      %v731 = vld [vmem:[#allocation2 + $0x18] sm:$0xff]
      %v732 = vadd.f32 %v728, %v729
      %v733 = vadd.f32 %v732, %v730
      %v734 = vadd.f32 %v733, %v731
      %735 = vadd.xlane.f32.xlu0 %v734
      %v736 = vpop.xlane.xlu0 %735
      %v737 = vrot.slane %v736, 4
      %v738 = vadd.f32 %v736, %v737
      %v739 = vrot.slane %v738, 2
      %v740 = vadd.f32 %v738, %v739
      %v741 = vrot.slane %v740, 1
      %v742 = vadd.f32 %v740, %v741
      %s743 = vtos %v742
      %s744 = smul.f32 %s743, 0.00024414063
      %v745 = vlaneseq
      %v746 = vshrl.u32 %v745, 7
      %v747 = vlaneseq
      %v748 = vand.u32 %v747, 127
      %vm749 = vcmp.eq.s32.totalorder %v746, 0
      %vm750 = vcmp.eq.s32.totalorder %v748, 0
      %vm751 = vmand %vm749, %vm750
      %v752 = vstv %s744
      %v753 = vsel %vm751, %v752, 0.0
      %754 = vst [vmem:[#allocation11] sm:$0xff] %v753
    $region41: #{tpu_custom_call.1} parent=1 // pred_fallthru
      _
    // Predicated region
    $region42: #{tpu_custom_call.1} parent=1 // pred_check
      _
    $region43: #{tpu_custom_call.1} parent=1 // pred_check_branch
      %756 = sbr.rel (0) target = $region45
    $region44: #{tpu_custom_call.1} parent=1 // pred_region
      %s758 = ssub.s32 128, 128
      %759 = vsyncadd [#allocation5], %s758
      %s761 = sshll.u32 [#allocation11], 4
      %s762 = int_to_ptr.vmem [resolvable:$true] %s761
      %764 = dma.vmem_to_hbm [thread:$0]  %s762, 128, %s4, [#allocation5]
    $region45: #{tpu_custom_call.1} parent=1 // pred_fallthru
      _
    // Predicated region
    $region46: #{tpu_custom_call.1} parent=1 // pred_check
      _
    $region47: #{tpu_custom_call.1} parent=1 // pred_check_branch
      %766 = sbr.rel (0) target = $region49
    $region48: #{tpu_custom_call.1} parent=1 // pred_region
      %767 = dma.done [#allocation5], 128
    $region49: #{tpu_custom_call.1} parent=1 // pred_fallthru
      _
    %768 = vsyncpa [#allocation4], 1
    %769 = vsyncpa [#allocation7], 1
    %770 = vsyncpa [#allocation10], 1
    %771 = vsyncpa [#allocation5], 1

</llo_original>
